<compile_context>
chip_gen: v7x
topology: tpu7x:2x2x1
jax: 0.10.0
libtpu: 0.0.40
codegen_flags: <defaults>
</compile_context>

<pallas_src>
import functools

import jax
import jax.numpy as jnp
from jax.experimental import pallas as pl
from jax.experimental.pallas import tpu as pltpu

BN_EPS = 1e-5
LANE = 128


def _task_branch_kernel(x_ref, g_ref, w1x_ref, w1g_ref, b1_ref,
                        w2_ref, b2_ref, w3_ref, b3_ref, out_ref,
                        *, hw, tile_n, need_mask, inv_hw):
    s = pl.program_id(1)

    @pl.when(s == 0)
    def _():
        out_ref[...] = jnp.zeros_like(out_ref)

    x = x_ref[...]                                     # [Cin, tile_n]
    g = g_ref[...]                                     # [Cg,  tile_n]

    # Conv1x1 on concatenated channels == sum of two matmuls (BN1 pre-folded).
    h1 = (jnp.dot(w1x_ref[...], x, preferred_element_type=jnp.float32)
          + jnp.dot(w1g_ref[...], g, preferred_element_type=jnp.float32)
          + b1_ref[...])                               # [hidden, tile_n]
    h1 = jnp.maximum(h1, 0.0)

    # Conv1x1 hidden -> hidden//2 (BN2 pre-folded) + ReLU.
    h2 = jnp.dot(w2_ref[...], h1, preferred_element_type=jnp.float32) + b2_ref[...]
    h2 = jnp.maximum(h2, 0.0)                          # [hidden//2, tile_n]

    # Final classifier conv.
    logits = jnp.dot(w3_ref[...], h2, preferred_element_type=jnp.float32) + b3_ref[...]

    if need_mask:
        # Zero contributions from spatial-padding pixels (cheap VPU lane mask;
        # padded input pixels still produce nonzero logits via the biases).
        lane = jax.lax.broadcasted_iota(jnp.int32, logits.shape, 1)
        valid = (s * tile_n + lane) < hw
        logits = jnp.where(valid, logits, 0.0)

    # Global average pool: accumulate spatial sum in the resident output block.
    out_ref[...] += jnp.sum(logits, axis=-1, keepdims=True)   # [out_c, 1]

    @pl.when(s == pl.num_programs(1) - 1)
    def _():
        out_ref[...] *= inv_hw


def _choose_tile(hw, cin, cg, hidden, h2c, out_c, *, max_tile=2048,
                 budget_bytes=24 << 20):
    """Largest lane-aligned spatial tile that keeps VMEM use well under budget."""
    t = min(max_tile, pl.cdiv(hw, LANE) * LANE)
    # double-buffered x+g tiles + live intermediates (f32).
    per_lane_bytes = 4 * (2 * (cin + cg) + hidden + h2c + out_c)
    while t > LANE and t * per_lane_bytes > budget_bytes:
        t -= LANE
    return t


def task_branch_forward(x, guidance, params, *, max_tile=2048):
    """x: [B, Cin, H, W]; guidance: [B, Cg, H, W] or None. Returns [B, out_c]."""
    B, Cin, H, W = x.shape
    HW = H * W
    hidden = params["w1"].shape[0]
    h2c = params["w2"].shape[0]
    out_c = params["w3"].shape[0]

    # --- Fold eval-mode BatchNorm into the preceding 1x1 convs (exact). ---
    s1 = params["gamma1"] * jax.lax.rsqrt(params["var1"] + BN_EPS)
    w1 = params["w1"] * s1[:, None]
    b1 = (params["b1"] - params["mean1"]) * s1 + params["beta1"]
    s2 = params["gamma2"] * jax.lax.rsqrt(params["var2"] + BN_EPS)
    w2 = params["w2"] * s2[:, None]
    b2 = (params["b2"] - params["mean2"]) * s2 + params["beta2"]
    w3, b3 = params["w3"], params["b3"]

    # --- Layout: keep NCHW, flatten spatial onto the lane axis (free view). ---
    x2 = x.reshape(B, Cin, HW).astype(jnp.float32)
    if guidance is not None:
        Cg = guidance.shape[1]
        g2 = guidance.reshape(B, Cg, HW).astype(jnp.float32)
        w1x, w1g = w1[:, :Cin], w1[:, Cin:]
    else:
        # TODO(synk): guidance-free path still feeds a 1-channel zero dummy to
        #             keep a single kernel signature (negligible extra work).
        Cg = 1
        g2 = jnp.zeros((B, 1, HW), jnp.float32)
        w1x, w1g = w1, jnp.zeros((hidden, 1), w1.dtype)

    tile_n = _choose_tile(HW, Cin, Cg, hidden, h2c, out_c, max_tile=max_tile)
    n_tiles = pl.cdiv(HW, tile_n)
    hw_pad = n_tiles * tile_n
    need_mask = hw_pad != HW
    if need_mask:
        pad = ((0, 0), (0, 0), (0, hw_pad - HW))
        x2 = jnp.pad(x2, pad)
        g2 = jnp.pad(g2, pad)

    grid = (B, n_tiles)
    kernel = functools.partial(_task_branch_kernel, hw=HW, tile_n=tile_n,
                               need_mask=need_mask, inv_hw=1.0 / HW)

    def full(r, c):
        return pl.BlockSpec((r, c), lambda b, s: (0, 0))

    out3d = pl.pallas_call(
        kernel,
        out_shape=jax.ShapeDtypeStruct((B, out_c, 1), jnp.float32),
        grid_spec=pltpu.PrefetchScalarGridSpec(
            num_scalar_prefetch=0,
            grid=grid,
            in_specs=[
                pl.BlockSpec((None, Cin, tile_n), lambda b, s: (b, 0, s)),  # x tile
                pl.BlockSpec((None, Cg, tile_n), lambda b, s: (b, 0, s)),   # guidance tile
                full(hidden, Cin),     # w1 (x half, BN1-folded)
                full(hidden, Cg),      # w1 (guidance half, BN1-folded)
                full(hidden, 1),       # b1 (BN1-folded)
                full(h2c, hidden),     # w2 (BN2-folded)
                full(h2c, 1),          # b2 (BN2-folded)
                full(out_c, h2c),      # w3
                full(out_c, 1),        # b3
            ],
            out_specs=pl.BlockSpec((None, out_c, 1), lambda b, s: (b, 0, 0)),
        ),
        compiler_params=pltpu.CompilerParams(
            dimension_semantics=("parallel", "arbitrary")),
    )(x2, g2,
      w1x.astype(jnp.float32), w1g.astype(jnp.float32), b1.reshape(hidden, 1),
      w2.astype(jnp.float32), b2.reshape(h2c, 1),
      w3.astype(jnp.float32), b3.reshape(out_c, 1))

    return out3d.reshape(B, out_c)


def _reference(x, guidance, params):
    """Pure-JAX reference of the PyTorch eval-mode forward."""
    comb = jnp.concatenate([x, guidance], axis=1) if guidance is not None else x

    def conv1x1(t, w, b):
        return jnp.einsum("bchw,oc->bohw", t, w) + b[None, :, None, None]

    def bn(t, g, be, m, v):
        return (g[None, :, None, None] * (t - m[None, :, None, None])
                * jax.lax.rsqrt(v[None, :, None, None] + BN_EPS)
                + be[None, :, None, None])

    h = jnp.maximum(bn(conv1x1(comb, params["w1"], params["b1"]),
                       params["gamma1"], params["beta1"],
                       params["mean1"], params["var1"]), 0.0)
    h = jnp.maximum(bn(conv1x1(h, params["w2"], params["b2"]),
                       params["gamma2"], params["beta2"],
                       params["mean2"], params["var2"]), 0.0)
    logits = conv1x1(h, params["w3"], params["b3"])
    return jnp.mean(logits, axis=(2, 3))


def _init_params(key, total_channels, hidden_channels, out_channels):
    """Deterministic synthetic parameters matching the nn.Module shapes."""
    h2 = hidden_channels // 2
    ks = jax.random.split(key, 14)

    def n(k, shape, s=0.1):
        return s * jax.random.normal(k, shape, jnp.float32)

    return {
        # Conv2d(total, hidden, 1): weight [hidden, total, 1, 1] stored as [hidden, total]
        "w1": n(ks[0], (hidden_channels, total_channels)),
        "b1": n(ks[1], (hidden_channels,)),
        "gamma1": 1.0 + 0.05 * jax.random.normal(ks[2], (hidden_channels,), jnp.float32),
        "beta1": n(ks[3], (hidden_channels,), 0.05),
        "mean1": n(ks[4], (hidden_channels,)),
        "var1": 1.0 + 0.1 * jax.random.uniform(ks[5], (hidden_channels,), jnp.float32),
        # Conv2d(hidden, hidden//2, 1)
        "w2": n(ks[6], (h2, hidden_channels)),
        "b2": n(ks[7], (h2,)),
        "gamma2": 1.0 + 0.05 * jax.random.normal(ks[8], (h2,), jnp.float32),
        "beta2": n(ks[9], (h2,), 0.05),
        "mean2": n(ks[10], (h2,)),
        "var2": 1.0 + 0.1 * jax.random.uniform(ks[11], (h2,), jnp.float32),
        # Conv2d(hidden//2, out, 1)
        "w3": n(ks[12], (out_channels, h2)),
        "b3": n(ks[13], (out_channels,)),
    }


if __name__ == "__main__":
    key = jax.random.PRNGKey(0)
    kx, kg, kp = jax.random.split(key, 3)

    # Primary check: lane-aligned spatial size (H*W multiple of 128).
    B, Cin, Cg, H, W = 2, 4, 4, 16, 16
    hidden_channels, out_channels = 32, 8

    x = jax.random.normal(kx, (B, Cin, H, W), jnp.float32)
    guidance = jax.random.normal(kg, (B, Cg, H, W), jnp.float32)
    params = _init_params(kp, Cin + Cg, hidden_channels, out_channels)

    out = jax.block_until_ready(task_branch_forward(x, guidance, params))
    ref = jax.block_until_ready(_reference(x, guidance, params))
    assert out.shape == (B, out_channels)
    err = float(jnp.max(jnp.abs(out - ref)))
    assert err < 1e-4, f"mismatch vs pure-JAX reference: {err}"

    # Secondary check: ragged spatial size (H*W = 63, exercises pad + lane mask).
    Hr, Wr = 7, 9
    xr = jax.random.normal(kx, (B, Cin, Hr, Wr), jnp.float32)
    gr = jax.random.normal(kg, (B, Cg, Hr, Wr), jnp.float32)
    out_r = jax.block_until_ready(task_branch_forward(xr, gr, params))
    ref_r = jax.block_until_ready(_reference(xr, gr, params))
    err_r = float(jnp.max(jnp.abs(out_r - ref_r)))
    assert err_r < 1e-4, f"ragged-spatial mismatch vs reference: {err_r}"

    print("KERNEL_OK")
</pallas_src>

<mosaic_0001>
module attributes {stable_mosaic.version = 11 : i64} {
  func.func @_task_branch_kernel(%arg0: i32, %arg1: i32, %arg2: memref<1x4x256xf32, #tpu.memory_space<vmem>>, %arg3: memref<1x4x256xf32, #tpu.memory_space<vmem>>, %arg4: memref<32x4xf32, #tpu.memory_space<vmem>>, %arg5: memref<32x4xf32, #tpu.memory_space<vmem>>, %arg6: memref<32x1xf32, #tpu.memory_space<vmem>>, %arg7: memref<16x32xf32, #tpu.memory_space<vmem>>, %arg8: memref<16x1xf32, #tpu.memory_space<vmem>>, %arg9: memref<8x16xf32, #tpu.memory_space<vmem>>, %arg10: memref<8x1xf32, #tpu.memory_space<vmem>>, %arg11: memref<1x8x1xf32, #tpu.memory_space<vmem>>) attributes {dimension_semantics = [#tpu.dimension_semantics<parallel>, #tpu.dimension_semantics<arbitrary>], iteration_bounds = array<i64: 2, 1>, scalar_prefetch = 0 : i64, scratch_operands = 0 : i64, tpu.core_type = #tpu.core_type<tc>, window_params = [{transform_indices = @transform_0, window_bounds = array<i64: 1, 4, 256>}, {transform_indices = @transform_1, window_bounds = array<i64: 1, 4, 256>}, {pipeline_mode = #tpu.pipeline_mode<synchronous>, transform_indices = @transform_2, window_bounds = array<i64: 32, 4>}, {pipeline_mode = #tpu.pipeline_mode<synchronous>, transform_indices = @transform_3, window_bounds = array<i64: 32, 4>}, {pipeline_mode = #tpu.pipeline_mode<synchronous>, transform_indices = @transform_4, window_bounds = array<i64: 32, 1>}, {pipeline_mode = #tpu.pipeline_mode<synchronous>, transform_indices = @transform_5, window_bounds = array<i64: 16, 32>}, {pipeline_mode = #tpu.pipeline_mode<synchronous>, transform_indices = @transform_6, window_bounds = array<i64: 16, 1>}, {pipeline_mode = #tpu.pipeline_mode<synchronous>, transform_indices = @transform_7, window_bounds = array<i64: 8, 16>}, {pipeline_mode = #tpu.pipeline_mode<synchronous>, transform_indices = @transform_8, window_bounds = array<i64: 8, 1>}, {transform_indices = @transform_9, window_bounds = array<i64: 1, 8, 1>}]} {
    %c0_i32 = arith.constant 0 : i32
    %0 = arith.cmpi eq, %arg1, %c0_i32 : i32
    %1 = arith.extui %0 : i1 to i32
    %c0_i32_0 = arith.constant 0 : i32
    %2 = arith.cmpi ne, %1, %c0_i32_0 : i32
    scf.if %2 {
      %cst_34 = arith.constant 0.000000e+00 : f32
      %40 = vector.broadcast %cst_34 : f32 to vector<8x1xf32>
      %c0_35 = arith.constant 0 : index
      %c0_36 = arith.constant 0 : index
      %c0_37 = arith.constant 0 : index
      %41 = vector.load %arg11[%c0_35, %c0_36, %c0_37] : memref<1x8x1xf32, #tpu.memory_space<vmem>>, vector<1x8x1xf32>
      %42 = vector.shape_cast %41 : vector<1x8x1xf32> to vector<8x1xf32>
      %43 = vector.shape_cast %40 : vector<8x1xf32> to vector<1x8x1xf32>
      tpu.vector_store %arg11[%c0_35, %c0_36, %c0_37], %43 {strides = array<i32>} : memref<1x8x1xf32, #tpu.memory_space<vmem>>, vector<1x8x1xf32>,
    } else {
    }
    %c0 = arith.constant 0 : index
    %c0_1 = arith.constant 0 : index
    %c0_2 = arith.constant 0 : index
    %3 = vector.load %arg2[%c0, %c0_1, %c0_2] : memref<1x4x256xf32, #tpu.memory_space<vmem>>, vector<1x4x256xf32>
    %4 = vector.shape_cast %3 : vector<1x4x256xf32> to vector<4x256xf32>
    %c0_3 = arith.constant 0 : index
    %c0_4 = arith.constant 0 : index
    %c0_5 = arith.constant 0 : index
    %5 = vector.load %arg3[%c0_3, %c0_4, %c0_5] : memref<1x4x256xf32, #tpu.memory_space<vmem>>, vector<1x4x256xf32>
    %6 = vector.shape_cast %5 : vector<1x4x256xf32> to vector<4x256xf32>
    %c0_6 = arith.constant 0 : index
    %c0_7 = arith.constant 0 : index
    %7 = vector.load %arg4[%c0_6, %c0_7] : memref<32x4xf32, #tpu.memory_space<vmem>>, vector<32x4xf32>
    %cst = arith.constant dense<0.000000e+00> : vector<32x256xf32>
    %8 = tpu.matmul %7, %4, %cst {dimension_numbers = #tpu.dot_dimension_numbers<[1], [0], [0], [1], [0, 0, 1, 1], [], []>} : vector<32x4xf32>, vector<4x256xf32>, vector<32x256xf32> -> vector<32x256xf32>
    %c0_8 = arith.constant 0 : index
    %c0_9 = arith.constant 0 : index
    %9 = vector.load %arg5[%c0_8, %c0_9] : memref<32x4xf32, #tpu.memory_space<vmem>>, vector<32x4xf32>
    %cst_10 = arith.constant dense<0.000000e+00> : vector<32x256xf32>
    %10 = tpu.matmul %9, %6, %cst_10 {dimension_numbers = #tpu.dot_dimension_numbers<[1], [0], [0], [1], [0, 0, 1, 1], [], []>} : vector<32x4xf32>, vector<4x256xf32>, vector<32x256xf32> -> vector<32x256xf32>
    %11 = arith.addf %8, %10 : vector<32x256xf32>
    %c0_11 = arith.constant 0 : index
    %c0_12 = arith.constant 0 : index
    %12 = vector.load %arg6[%c0_11, %c0_12] : memref<32x1xf32, #tpu.memory_space<vmem>>, vector<32x1xf32>
    %13 = vector.broadcast %12 : vector<32x1xf32> to vector<32x256xf32>
    %14 = arith.addf %11, %13 : vector<32x256xf32>
    %cst_13 = arith.constant 0.000000e+00 : f32
    %15 = vector.broadcast %cst_13 : f32 to vector<32x256xf32>
    %16 = arith.maximumf %14, %15 : vector<32x256xf32>
    %c0_14 = arith.constant 0 : index
    %c0_15 = arith.constant 0 : index
    %17 = vector.load %arg7[%c0_14, %c0_15] : memref<16x32xf32, #tpu.memory_space<vmem>>, vector<16x32xf32>
    %cst_16 = arith.constant dense<0.000000e+00> : vector<16x256xf32>
    %18 = tpu.matmul %17, %16, %cst_16 {dimension_numbers = #tpu.dot_dimension_numbers<[1], [0], [0], [1], [0, 0, 1, 1], [], []>} : vector<16x32xf32>, vector<32x256xf32>, vector<16x256xf32> -> vector<16x256xf32>
    %c0_17 = arith.constant 0 : index
    %c0_18 = arith.constant 0 : index
    %19 = vector.load %arg8[%c0_17, %c0_18] : memref<16x1xf32, #tpu.memory_space<vmem>>, vector<16x1xf32>
    %20 = vector.broadcast %19 : vector<16x1xf32> to vector<16x256xf32>
    %21 = arith.addf %18, %20 : vector<16x256xf32>
    %cst_19 = arith.constant 0.000000e+00 : f32
    %22 = vector.broadcast %cst_19 : f32 to vector<16x256xf32>
    %23 = arith.maximumf %21, %22 : vector<16x256xf32>
    %c0_20 = arith.constant 0 : index
    %c0_21 = arith.constant 0 : index
    %24 = vector.load %arg9[%c0_20, %c0_21] : memref<8x16xf32, #tpu.memory_space<vmem>>, vector<8x16xf32>
    %cst_22 = arith.constant dense<0.000000e+00> : vector<8x256xf32>
    %25 = tpu.matmul %24, %23, %cst_22 {dimension_numbers = #tpu.dot_dimension_numbers<[1], [0], [0], [1], [0, 0, 1, 1], [], []>} : vector<8x16xf32>, vector<16x256xf32>, vector<8x256xf32> -> vector<8x256xf32>
    %c0_23 = arith.constant 0 : index
    %c0_24 = arith.constant 0 : index
    %26 = vector.load %arg10[%c0_23, %c0_24] : memref<8x1xf32, #tpu.memory_space<vmem>>, vector<8x1xf32>
    %27 = vector.broadcast %26 : vector<8x1xf32> to vector<8x256xf32>
    %28 = arith.addf %25, %27 : vector<8x256xf32>
    %c0_25 = arith.constant 0 : index
    %c0_26 = arith.constant 0 : index
    %c0_27 = arith.constant 0 : index
    %29 = vector.load %arg11[%c0_25, %c0_26, %c0_27] : memref<1x8x1xf32, #tpu.memory_space<vmem>>, vector<1x8x1xf32>
    %30 = vector.shape_cast %29 : vector<1x8x1xf32> to vector<8x1xf32>
    %cst_28 = arith.constant dense<0.000000e+00> : vector<8xf32>
    %31 = vector.multi_reduction <add>, %28, %cst_28 [1] : vector<8x256xf32> to vector<8xf32>
    %32 = vector.shape_cast %31 : vector<8xf32> to vector<8x1xf32>
    %33 = arith.addf %30, %32 : vector<8x1xf32>
    %c0_29 = arith.constant 0 : index
    %c0_30 = arith.constant 0 : index
    %c0_31 = arith.constant 0 : index
    %34 = vector.load %arg11[%c0_29, %c0_30, %c0_31] : memref<1x8x1xf32, #tpu.memory_space<vmem>>, vector<1x8x1xf32>
    %35 = vector.shape_cast %34 : vector<1x8x1xf32> to vector<8x1xf32>
    %36 = vector.shape_cast %33 : vector<8x1xf32> to vector<1x8x1xf32>
    tpu.vector_store %arg11[%c0_29, %c0_30, %c0_31], %36 {strides = array<i32>} : memref<1x8x1xf32, #tpu.memory_space<vmem>>, vector<1x8x1xf32>,
    %c0_i32_32 = arith.constant 0 : i32
    %37 = arith.cmpi eq, %arg1, %c0_i32_32 : i32
    %38 = arith.extui %37 : i1 to i32
    %c0_i32_33 = arith.constant 0 : i32
    %39 = arith.cmpi ne, %38, %c0_i32_33 : i32
    scf.if %39 {
      %c0_34 = arith.constant 0 : index
      %c0_35 = arith.constant 0 : index
      %c0_36 = arith.constant 0 : index
      %40 = vector.load %arg11[%c0_34, %c0_35, %c0_36] : memref<1x8x1xf32, #tpu.memory_space<vmem>>, vector<1x8x1xf32>
      %41 = vector.shape_cast %40 : vector<1x8x1xf32> to vector<8x1xf32>
      %cst_37 = arith.constant 3.906250e-03 : f32
      %42 = vector.broadcast %cst_37 : f32 to vector<8x1xf32>
      %43 = arith.mulf %41, %42 : vector<8x1xf32>
      %c0_38 = arith.constant 0 : index
      %c0_39 = arith.constant 0 : index
      %c0_40 = arith.constant 0 : index
      %44 = vector.load %arg11[%c0_38, %c0_39, %c0_40] : memref<1x8x1xf32, #tpu.memory_space<vmem>>, vector<1x8x1xf32>
      %45 = vector.shape_cast %44 : vector<1x8x1xf32> to vector<8x1xf32>
      %46 = vector.shape_cast %43 : vector<8x1xf32> to vector<1x8x1xf32>
      tpu.vector_store %arg11[%c0_38, %c0_39, %c0_40], %46 {strides = array<i32>} : memref<1x8x1xf32, #tpu.memory_space<vmem>>, vector<1x8x1xf32>,
    } else {
    }
    return
  }
  func.func @transform_0(%arg0: i32, %arg1: i32) -> (i32, i32, i32) {
    %c0_i32 = arith.constant 0 : i32
    %c0_i32_0 = arith.constant 0 : i32
    return %arg0, %c0_i32, %arg1 : i32, i32, i32
  }
  func.func @transform_1(%arg0: i32, %arg1: i32) -> (i32, i32, i32) {
    %c0_i32 = arith.constant 0 : i32
    %c0_i32_0 = arith.constant 0 : i32
    return %arg0, %c0_i32, %arg1 : i32, i32, i32
  }
  func.func @transform_2(%arg0: i32, %arg1: i32) -> (i32, i32) {
    %c0_i32 = arith.constant 0 : i32
    %c0_i32_0 = arith.constant 0 : i32
    %c0_i32_1 = arith.constant 0 : i32
    return %c0_i32, %c0_i32_0 : i32, i32
  }
  func.func @transform_3(%arg0: i32, %arg1: i32) -> (i32, i32) {
    %c0_i32 = arith.constant 0 : i32
    %c0_i32_0 = arith.constant 0 : i32
    %c0_i32_1 = arith.constant 0 : i32
    return %c0_i32, %c0_i32_0 : i32, i32
  }
  func.func @transform_4(%arg0: i32, %arg1: i32) -> (i32, i32) {
    %c0_i32 = arith.constant 0 : i32
    %c0_i32_0 = arith.constant 0 : i32
    %c0_i32_1 = arith.constant 0 : i32
    return %c0_i32, %c0_i32_0 : i32, i32
  }
  func.func @transform_5(%arg0: i32, %arg1: i32) -> (i32, i32) {
    %c0_i32 = arith.constant 0 : i32
    %c0_i32_0 = arith.constant 0 : i32
    %c0_i32_1 = arith.constant 0 : i32
    return %c0_i32, %c0_i32_0 : i32, i32
  }
  func.func @transform_6(%arg0: i32, %arg1: i32) -> (i32, i32) {
    %c0_i32 = arith.constant 0 : i32
    %c0_i32_0 = arith.constant 0 : i32
    %c0_i32_1 = arith.constant 0 : i32
    return %c0_i32, %c0_i32_0 : i32, i32
  }
  func.func @transform_7(%arg0: i32, %arg1: i32) -> (i32, i32) {
    %c0_i32 = arith.constant 0 : i32
    %c0_i32_0 = arith.constant 0 : i32
    %c0_i32_1 = arith.constant 0 : i32
    return %c0_i32, %c0_i32_0 : i32, i32
  }
  func.func @transform_8(%arg0: i32, %arg1: i32) -> (i32, i32) {
    %c0_i32 = arith.constant 0 : i32
    %c0_i32_0 = arith.constant 0 : i32
    %c0_i32_1 = arith.constant 0 : i32
    return %c0_i32, %c0_i32_0 : i32, i32
  }
  func.func @transform_9(%arg0: i32, %arg1: i32) -> (i32, i32, i32) {
    %c0_i32 = arith.constant 0 : i32
    %c0_i32_0 = arith.constant 0 : i32
    %c0_i32_1 = arith.constant 0 : i32
    return %arg0, %c0_i32, %c0_i32_0 : i32, i32, i32
  }
}

</mosaic_0001>

<llo_original>
// kernel: tpu_custom_call.1
$region0: #{tpu_custom_call.1}
  #allocation0 [shape = 'u32[]', space=smem, size = 0x4, offset = 0x4, fixed_abs, tag = 'smem constant byte address 0x4 - core index']
  #allocation1 [shape = 'u32[144,128]{1,0:T(1,128)}', space=vmem, size = 0x12000, scoped, tag = 'internal scratch']
  %s0 = inlined_call_operand.vmem [shape: f32[2,4,256], index: 0, kind: input, shape index: {}]
  %s1 = inlined_call_operand.vmem [shape: f32[2,4,256], index: 1, kind: input, shape index: {}]
  %s2 = inlined_call_operand.vmem [shape: f32[32,4], index: 2, kind: input, shape index: {}]
  %s3 = inlined_call_operand.vmem [shape: f32[32,4], index: 3, kind: input, shape index: {}]
  %s4 = inlined_call_operand.vmem [shape: f32[32,1], index: 4, kind: input, shape index: {}]
  %s5 = inlined_call_operand.vmem [shape: f32[16,32], index: 5, kind: input, shape index: {}]
  %s6 = inlined_call_operand.vmem [shape: f32[16,1], index: 6, kind: input, shape index: {}]
  %s7 = inlined_call_operand.vmem [shape: f32[8,16], index: 7, kind: input, shape index: {}]
  %s8 = inlined_call_operand.vmem [shape: f32[8,1], index: 8, kind: input, shape index: {}]
  %s9 = inlined_call_operand.vmem [shape: f32[2,8,1], index: 9, kind: output, shape index: {}]
  %s10 = sld [smem:[#allocation0]]
  $region77: #{tpu_custom_call.1} parent=0
    _
  %s12 = ssub.s32 1, %s10
  %s13 = scalar_select 0, %s12, %s10
  loop: start=0, step=1, limit=4
  $region2: #{tpu_custom_call.1} parent=0 // loop_pre_header
    _
  $region3: #{tpu_custom_call.1} parent=0 // loop_header
    %s15 = sphi 0, %s19
    %p16 = scmp.ge.s32.totalorder %s15, 4
    %s22 = sphi 0, %s34
    %s23 = sphi 0, %s30
    %s24 = sphi 0, %s22
    %s25 = sphi 0, %s23
    %s26 = sphi 0, %s24
    %s27 = sphi 0, %s25
    %s39 = sphi 0, %s41
    %s42 = sphi 0, %s39
    %s43 = sphi 0, %s42
    %s59 = sphi 0, %s43
    %s67 = sphi 0, %s69
    %s70 = sphi 0, %s67
    %s71 = sphi 0, %s70
    %s87 = sphi 0, %s71
    %s91 = sphi 0, %s91
    %s93 = sphi 0, %s91
    %s94 = sphi 0, %s93
    %s108 = sphi 0, %s94
    %s112 = sphi 0, %s112
    %s114 = sphi 0, %s112
    %s115 = sphi 0, %s114
    %s129 = sphi 0, %s115
    %s133 = sphi 0, %s133
    %s135 = sphi 0, %s133
    %s136 = sphi 0, %s135
    %s150 = sphi 0, %s136
    %s154 = sphi 0, %s154
    %s156 = sphi 0, %s154
    %s157 = sphi 0, %s156
    %s171 = sphi 0, %s157
    %s175 = sphi 0, %s175
    %s177 = sphi 0, %s175
    %s178 = sphi 0, %s177
    %s192 = sphi 0, %s178
    %s196 = sphi 0, %s196
    %s198 = sphi 0, %s196
    %s199 = sphi 0, %s198
    %s213 = sphi 0, %s199
    %s217 = sphi 0, %s217
    %s219 = sphi 0, %s217
    %s220 = sphi 0, %s219
    %s234 = sphi 0, %s220
    %s240 = sphi 0, %s242
    %s243 = sphi 0, %s240
    %s244 = sphi 0, %s243
    %s260 = sphi 0, %s244
  $region4: #{tpu_custom_call.1} parent=0 // loop_header_branch
    %18 = sbr.rel (%p16) target = $region8
  $region5: #{tpu_custom_call.1} parent=0 // loop_body
    %s20 = ssub.s32 %s15, 1
    %s21 = ssub.s32 %s15, 2
    %s28 = sadd.s32 1, %s23
    %p29 = scmp.ge.s32.totalorder %s28, 1
    %s30 = scalar_select %p29, 0, %s28
    %s31 = sadd.s32 1, %s22
    %s32 = scalar_select %p29, %s31, %s22
    %p33 = scmp.ge.s32.totalorder %s32, 2
    %s34 = scalar_select %p33, 0, %s32
    %s35 = ssub.s32 %s22, %s34
    %s36 = ssub.s32 %s23, %s30
    %s37 = sor.u32 %s35, %s36
    %p38 = scmp.eq.s32.totalorder %s37, 0
    %s40 = sadd.s32 %s39, 1
    %s41 = scalar_select %p38, %s39, %s40
    %p44 = pneg %p38
    %p45 = scmp.eq.s32.totalorder %s15, 1
    %p46 = por %p44, %p45
    %p47 = scmp.ne.s32.totalorder %s39, %s42
    %p48 = scmp.eq.s32.totalorder %s15, 0
    %p49 = por %p47, %p48
    %p50 = scmp.ne.s32.totalorder %s39, %s42
    %p51 = scmp.eq.s32.totalorder %s20, 1
    %p52 = por %p50, %p51
    %p53 = scmp.ne.s32.totalorder %s42, %s43
    %p54 = scmp.eq.s32.totalorder %s20, 0
    %p55 = por %p53, %p54
    %p56 = scmp.ne.s32.totalorder %s42, %s43
    %p57 = scmp.eq.s32.totalorder %s21, 1
    %p58 = por %p56, %p57
    %p60 = scmp.ne.s32.totalorder %s43, %s59
    %p61 = scmp.eq.s32.totalorder %s21, 0
    %p62 = por %p60, %p61
    %s63 = ssub.s32 %s22, %s34
    %s64 = ssub.s32 %s23, %s30
    %s65 = sor.u32 %s63, %s64
    %p66 = scmp.eq.s32.totalorder %s65, 0
    %s68 = sadd.s32 %s67, 1
    %s69 = scalar_select %p66, %s67, %s68
    %p72 = pneg %p66
    %p73 = scmp.eq.s32.totalorder %s15, 1
    %p74 = por %p72, %p73
    %p75 = scmp.ne.s32.totalorder %s67, %s70
    %p76 = scmp.eq.s32.totalorder %s15, 0
    %p77 = por %p75, %p76
    %p78 = scmp.ne.s32.totalorder %s67, %s70
    %p79 = scmp.eq.s32.totalorder %s20, 1
    %p80 = por %p78, %p79
    %p81 = scmp.ne.s32.totalorder %s70, %s71
    %p82 = scmp.eq.s32.totalorder %s20, 0
    %p83 = por %p81, %p82
    %p84 = scmp.ne.s32.totalorder %s70, %s71
    %p85 = scmp.eq.s32.totalorder %s21, 1
    %p86 = por %p84, %p85
    %p88 = scmp.ne.s32.totalorder %s71, %s87
    %p89 = scmp.eq.s32.totalorder %s21, 0
    %p90 = por %p88, %p89
    %s92 = sadd.s32 %s91, 1
    %p95 = scmp.eq.s32.totalorder %s15, 1
    %p96 = scmp.ne.s32.totalorder %s91, %s93
    %p97 = scmp.eq.s32.totalorder %s15, 0
    %p98 = por %p96, %p97
    %p99 = scmp.ne.s32.totalorder %s91, %s93
    %p100 = scmp.eq.s32.totalorder %s20, 1
    %p101 = por %p99, %p100
    %p102 = scmp.ne.s32.totalorder %s93, %s94
    %p103 = scmp.eq.s32.totalorder %s20, 0
    %p104 = por %p102, %p103
    %p105 = scmp.ne.s32.totalorder %s93, %s94
    %p106 = scmp.eq.s32.totalorder %s21, 1
    %p107 = por %p105, %p106
    %p109 = scmp.ne.s32.totalorder %s94, %s108
    %p110 = scmp.eq.s32.totalorder %s21, 0
    %p111 = por %p109, %p110
    %s113 = sadd.s32 %s112, 1
    %p116 = scmp.eq.s32.totalorder %s15, 1
    %p117 = scmp.ne.s32.totalorder %s112, %s114
    %p118 = scmp.eq.s32.totalorder %s15, 0
    %p119 = por %p117, %p118
    %p120 = scmp.ne.s32.totalorder %s112, %s114
    %p121 = scmp.eq.s32.totalorder %s20, 1
    %p122 = por %p120, %p121
    %p123 = scmp.ne.s32.totalorder %s114, %s115
    %p124 = scmp.eq.s32.totalorder %s20, 0
    %p125 = por %p123, %p124
    %p126 = scmp.ne.s32.totalorder %s114, %s115
    %p127 = scmp.eq.s32.totalorder %s21, 1
    %p128 = por %p126, %p127
    %p130 = scmp.ne.s32.totalorder %s115, %s129
    %p131 = scmp.eq.s32.totalorder %s21, 0
    %p132 = por %p130, %p131
    %s134 = sadd.s32 %s133, 1
    %p137 = scmp.eq.s32.totalorder %s15, 1
    %p138 = scmp.ne.s32.totalorder %s133, %s135
    %p139 = scmp.eq.s32.totalorder %s15, 0
    %p140 = por %p138, %p139
    %p141 = scmp.ne.s32.totalorder %s133, %s135
    %p142 = scmp.eq.s32.totalorder %s20, 1
    %p143 = por %p141, %p142
    %p144 = scmp.ne.s32.totalorder %s135, %s136
    %p145 = scmp.eq.s32.totalorder %s20, 0
    %p146 = por %p144, %p145
    %p147 = scmp.ne.s32.totalorder %s135, %s136
    %p148 = scmp.eq.s32.totalorder %s21, 1
    %p149 = por %p147, %p148
    %p151 = scmp.ne.s32.totalorder %s136, %s150
    %p152 = scmp.eq.s32.totalorder %s21, 0
    %p153 = por %p151, %p152
    %s155 = sadd.s32 %s154, 1
    %p158 = scmp.eq.s32.totalorder %s15, 1
    %p159 = scmp.ne.s32.totalorder %s154, %s156
    %p160 = scmp.eq.s32.totalorder %s15, 0
    %p161 = por %p159, %p160
    %p162 = scmp.ne.s32.totalorder %s154, %s156
    %p163 = scmp.eq.s32.totalorder %s20, 1
    %p164 = por %p162, %p163
    %p165 = scmp.ne.s32.totalorder %s156, %s157
    %p166 = scmp.eq.s32.totalorder %s20, 0
    %p167 = por %p165, %p166
    %p168 = scmp.ne.s32.totalorder %s156, %s157
    %p169 = scmp.eq.s32.totalorder %s21, 1
    %p170 = por %p168, %p169
    %p172 = scmp.ne.s32.totalorder %s157, %s171
    %p173 = scmp.eq.s32.totalorder %s21, 0
    %p174 = por %p172, %p173
    %s176 = sadd.s32 %s175, 1
    %p179 = scmp.eq.s32.totalorder %s15, 1
    %p180 = scmp.ne.s32.totalorder %s175, %s177
    %p181 = scmp.eq.s32.totalorder %s15, 0
    %p182 = por %p180, %p181
    %p183 = scmp.ne.s32.totalorder %s175, %s177
    %p184 = scmp.eq.s32.totalorder %s20, 1
    %p185 = por %p183, %p184
    %p186 = scmp.ne.s32.totalorder %s177, %s178
    %p187 = scmp.eq.s32.totalorder %s20, 0
    %p188 = por %p186, %p187
    %p189 = scmp.ne.s32.totalorder %s177, %s178
    %p190 = scmp.eq.s32.totalorder %s21, 1
    %p191 = por %p189, %p190
    %p193 = scmp.ne.s32.totalorder %s178, %s192
    %p194 = scmp.eq.s32.totalorder %s21, 0
    %p195 = por %p193, %p194
    %s197 = sadd.s32 %s196, 1
    %p200 = scmp.eq.s32.totalorder %s15, 1
    %p201 = scmp.ne.s32.totalorder %s196, %s198
    %p202 = scmp.eq.s32.totalorder %s15, 0
    %p203 = por %p201, %p202
    %p204 = scmp.ne.s32.totalorder %s196, %s198
    %p205 = scmp.eq.s32.totalorder %s20, 1
    %p206 = por %p204, %p205
    %p207 = scmp.ne.s32.totalorder %s198, %s199
    %p208 = scmp.eq.s32.totalorder %s20, 0
    %p209 = por %p207, %p208
    %p210 = scmp.ne.s32.totalorder %s198, %s199
    %p211 = scmp.eq.s32.totalorder %s21, 1
    %p212 = por %p210, %p211
    %p214 = scmp.ne.s32.totalorder %s199, %s213
    %p215 = scmp.eq.s32.totalorder %s21, 0
    %p216 = por %p214, %p215
    %s218 = sadd.s32 %s217, 1
    %p221 = scmp.eq.s32.totalorder %s15, 1
    %p222 = scmp.ne.s32.totalorder %s217, %s219
    %p223 = scmp.eq.s32.totalorder %s15, 0
    %p224 = por %p222, %p223
    %p225 = scmp.ne.s32.totalorder %s217, %s219
    %p226 = scmp.eq.s32.totalorder %s20, 1
    %p227 = por %p225, %p226
    %p228 = scmp.ne.s32.totalorder %s219, %s220
    %p229 = scmp.eq.s32.totalorder %s20, 0
    %p230 = por %p228, %p229
    %p231 = scmp.ne.s32.totalorder %s219, %s220
    %p232 = scmp.eq.s32.totalorder %s21, 1
    %p233 = por %p231, %p232
    %p235 = scmp.ne.s32.totalorder %s220, %s234
    %p236 = scmp.eq.s32.totalorder %s21, 0
    %p237 = por %p235, %p236
    %s238 = ssub.s32 %s22, %s34
    %p239 = scmp.eq.s32.totalorder %s238, 0
    %s241 = sadd.s32 %s240, 1
    %s242 = scalar_select %p239, %s240, %s241
    %p245 = pneg %p239
    %p246 = scmp.eq.s32.totalorder %s15, 1
    %p247 = por %p245, %p246
    %p248 = scmp.ne.s32.totalorder %s240, %s243
    %p249 = scmp.eq.s32.totalorder %s15, 0
    %p250 = por %p248, %p249
    %p251 = scmp.ne.s32.totalorder %s240, %s243
    %p252 = scmp.eq.s32.totalorder %s20, 1
    %p253 = por %p251, %p252
    %p254 = scmp.ne.s32.totalorder %s243, %s244
    %p255 = scmp.eq.s32.totalorder %s20, 0
    %p256 = por %p254, %p255
    %p257 = scmp.ne.s32.totalorder %s243, %s244
    %p258 = scmp.eq.s32.totalorder %s21, 1
    %p259 = por %p257, %p258
    %p261 = scmp.ne.s32.totalorder %s244, %s260
    %p262 = scmp.eq.s32.totalorder %s21, 0
    %p263 = por %p261, %p262
    %p264 = scmp.le.s32.totalorder 1, %s15
    %p265 = scmp.lt.s32.totalorder %s15, 3
    %p266 = pnand %p264, %p265
    %p267 = pneg %p266
    // Predicated region
    $region9: #{tpu_custom_call.1} parent=5 // pred_check
      _
    $region10: #{tpu_custom_call.1} parent=5 // pred_check_branch
      %269 = sbr.rel (%p266) target = $region12
    $region11: #{tpu_custom_call.1} parent=5 // pred_region
      %s270 = ssub.s32 %s15, 1
      // Predicated region
      $region13: #{tpu_custom_call.1} parent=11 // pred_check
        %p271 = pneg %p104
      $region14: #{tpu_custom_call.1} parent=11 // pred_check_branch
        %273 = sbr.rel (%p271) target = $region16
      $region15: #{tpu_custom_call.1} parent=11 // pred_region
        _
      $region16: #{tpu_custom_call.1} parent=11 // pred_fallthru
        _
      // Predicated region
      $region17: #{tpu_custom_call.1} parent=11 // pred_check
        %p274 = pneg %p125
      $region18: #{tpu_custom_call.1} parent=11 // pred_check_branch
        %276 = sbr.rel (%p274) target = $region20
      $region19: #{tpu_custom_call.1} parent=11 // pred_region
        _
      $region20: #{tpu_custom_call.1} parent=11 // pred_fallthru
        _
      // Predicated region
      $region21: #{tpu_custom_call.1} parent=11 // pred_check
        %p277 = pneg %p146
      $region22: #{tpu_custom_call.1} parent=11 // pred_check_branch
        %279 = sbr.rel (%p277) target = $region24
      $region23: #{tpu_custom_call.1} parent=11 // pred_region
        _
      $region24: #{tpu_custom_call.1} parent=11 // pred_fallthru
        _
      // Predicated region
      $region25: #{tpu_custom_call.1} parent=11 // pred_check
        %p280 = pneg %p167
      $region26: #{tpu_custom_call.1} parent=11 // pred_check_branch
        %282 = sbr.rel (%p280) target = $region28
      $region27: #{tpu_custom_call.1} parent=11 // pred_region
        _
      $region28: #{tpu_custom_call.1} parent=11 // pred_fallthru
        _
      // Predicated region
      $region29: #{tpu_custom_call.1} parent=11 // pred_check
        %p283 = pneg %p188
      $region30: #{tpu_custom_call.1} parent=11 // pred_check_branch
        %285 = sbr.rel (%p283) target = $region32
      $region31: #{tpu_custom_call.1} parent=11 // pred_region
        _
      $region32: #{tpu_custom_call.1} parent=11 // pred_fallthru
        _
      // Predicated region
      $region33: #{tpu_custom_call.1} parent=11 // pred_check
        %p286 = pneg %p209
      $region34: #{tpu_custom_call.1} parent=11 // pred_check_branch
        %288 = sbr.rel (%p286) target = $region36
      $region35: #{tpu_custom_call.1} parent=11 // pred_region
        _
      $region36: #{tpu_custom_call.1} parent=11 // pred_fallthru
        _
      // Predicated region
      $region37: #{tpu_custom_call.1} parent=11 // pred_check
        %p289 = pneg %p230
      $region38: #{tpu_custom_call.1} parent=11 // pred_check_branch
        %291 = sbr.rel (%p289) target = $region40
      $region39: #{tpu_custom_call.1} parent=11 // pred_region
        _
      $region40: #{tpu_custom_call.1} parent=11 // pred_fallthru
        _
    $region12: #{tpu_custom_call.1} parent=5 // pred_fallthru
      _
    %p292 = scmp.lt.s32.totalorder %s15, 2
    // Predicated region
    $region41: #{tpu_custom_call.1} parent=5 // pred_check
      %p293 = pneg %p292
    $region42: #{tpu_custom_call.1} parent=5 // pred_check_branch
      %295 = sbr.rel (%p293) target = $region44
    $region43: #{tpu_custom_call.1} parent=5 // pred_region
      // Predicated region
      $region45: #{tpu_custom_call.1} parent=43 // pred_check
        %p296 = pneg %p49
      $region46: #{tpu_custom_call.1} parent=43 // pred_check_branch
        %298 = sbr.rel (%p296) target = $region48
      $region47: #{tpu_custom_call.1} parent=43 // pred_region
        %s299 = smul.u32 2, %s23
        %p300 = scmp.lt.s32.totalorder %s22, 1
        %s301 = scalar_select %p300, %s22, 1
        %p302 = scmp.lt.s32.totalorder %s299, 1
        %s303 = scalar_select %p302, %s299, 1
        %s304 = smul.addr %s301, 2
        %s305 = sadd.s32 %s303, %s304
        %s306 = smul.addr %s305, 4
        %s307 = scalar_lea.vmem %s0, %s306
        %s308 = smul.u32 2, %s23
      $region48: #{tpu_custom_call.1} parent=43 // pred_fallthru
        _
      // Predicated region
      $region49: #{tpu_custom_call.1} parent=43 // pred_check
        %p309 = pneg %p77
      $region50: #{tpu_custom_call.1} parent=43 // pred_check_branch
        %311 = sbr.rel (%p309) target = $region52
      $region51: #{tpu_custom_call.1} parent=43 // pred_region
        %s312 = smul.u32 2, %s23
        %p313 = scmp.lt.s32.totalorder %s22, 1
        %s314 = scalar_select %p313, %s22, 1
        %p315 = scmp.lt.s32.totalorder %s312, 1
        %s316 = scalar_select %p315, %s312, 1
        %s317 = smul.addr %s314, 2
        %s318 = sadd.s32 %s316, %s317
        %s319 = smul.addr %s318, 4
        %s320 = scalar_lea.vmem %s1, %s319
        %s321 = smul.u32 2, %s23
      $region52: #{tpu_custom_call.1} parent=43 // pred_fallthru
        _
    $region44: #{tpu_custom_call.1} parent=5 // pred_fallthru
      _
    %p322 = scmp.le.s32.totalorder 1, %s15
    %p323 = scmp.lt.s32.totalorder %s15, 3
    %p324 = pnand %p322, %p323
    %p325 = pneg %p324
    // Predicated region
    $region53: #{tpu_custom_call.1} parent=5 // pred_check
      _
    $region54: #{tpu_custom_call.1} parent=5 // pred_check_branch
      %327 = sbr.rel (%p324) target = $region56
    $region55: #{tpu_custom_call.1} parent=5 // pred_region
      %s328 = ssub.s32 %s15, 1
      %s329 = smul.u32 2, %s25
      %p330 = scmp.lt.s32.totalorder %s24, 1
      %s331 = scalar_select %p330, %s24, 1
      %p332 = scmp.lt.s32.totalorder %s329, 1
      %s333 = scalar_select %p332, %s329, 1
      %s334 = smul.addr %s331, 2
      %s335 = sadd.s32 %s333, %s334
      %s336 = smul.addr %s335, 4
      %s337 = scalar_lea.vmem %s0, %s336
      %p338 = pneg %p55
      %p339 = pneg %p52
      %s340 = smul.u32 2, %s25
      %p341 = scmp.lt.s32.totalorder %s24, 1
      %s342 = scalar_select %p341, %s24, 1
      %p343 = scmp.lt.s32.totalorder %s340, 1
      %s344 = scalar_select %p343, %s340, 1
      %s345 = smul.addr %s342, 2
      %s346 = sadd.s32 %s344, %s345
      %s347 = smul.addr %s346, 4
      %s348 = scalar_lea.vmem %s1, %s347
      %p349 = pneg %p83
      %p350 = pneg %p80
      %p351 = pneg %p104
      %p352 = pneg %p101
      %p353 = pneg %p125
      %p354 = pneg %p122
      %p355 = pneg %p146
      %p356 = pneg %p143
      %p357 = pneg %p167
      %p358 = pneg %p164
      %p359 = pneg %p188
      %p360 = pneg %p185
      %p361 = pneg %p209
      %p362 = pneg %p206
      %p363 = pneg %p230
      %p364 = pneg %p227
      %p365 = pneg %p256
      %p366 = pneg %p253
      %p367 = scmp.lt.s32.totalorder %s24, 1
      %s368 = scalar_select %p367, %s24, 1
      %s369 = smul.addr %s368, 8
      %s370 = scalar_lea.vmem %s9, %s369
      %s371 = smul.u32 2, %s25
      %p372 = scmp.lt.s32.totalorder %s24, 1
      %s373 = scalar_select %p372, %s24, 1
      %p374 = scmp.lt.s32.totalorder %s371, 1
      %s375 = scalar_select %p374, %s371, 1
      %s376 = smul.addr %s373, 2
      %s377 = sadd.s32 %s375, %s376
      %s378 = smul.addr %s377, 4
      %s379 = scalar_lea.vmem %s0, %s378
      %s380 = smul.u32 2, %s25
      %s381 = smul.u32 2, %s25
      %p382 = scmp.lt.s32.totalorder %s24, 1
      %s383 = scalar_select %p382, %s24, 1
      %p384 = scmp.lt.s32.totalorder %s381, 1
      %s385 = scalar_select %p384, %s381, 1
      %s386 = smul.addr %s383, 2
      %s387 = sadd.s32 %s385, %s386
      %s388 = smul.addr %s387, 4
      %s389 = scalar_lea.vmem %s1, %s388
      %s390 = smul.u32 2, %s25
      %p391 = scmp.lt.s32.totalorder %s24, 1
      %s392 = scalar_select %p391, %s24, 1
      %s393 = smul.addr %s392, 8
      %s394 = scalar_lea.vmem %s9, %s393
      %p395 = scmp.eq.s32.totalorder %s25, 0
      // Predicated region
      $region57: #{tpu_custom_call.1} parent=55 // pred_check
        %p396 = pneg %p395
      $region58: #{tpu_custom_call.1} parent=55 // pred_check_branch
        %398 = sbr.rel (%p396) target = $region60
      $region59: #{tpu_custom_call.1} parent=55 // pred_region
        %vm399 = vcmask 7168
        %400 = vst.msk [vmem:[%s394] sm:$0xff] %vm399, 0.0
      $region60: #{tpu_custom_call.1} parent=55 // pred_fallthru
        _
      %v401 = vld [vmem:[%s379] sm:$0xff]
      %v402 = vld [vmem:[%s389] sm:$0xff]
      %v403 = vld [vmem:[%s2] sm:$0xff]
      %v404 = vld [vmem:[%s2 + $0x8] sm:$0xff]
      %v405 = vld [vmem:[%s2 + $0x10] sm:$0xff]
      %v406 = vld [vmem:[%s2 + $0x18] sm:$0xff]
      %v407 = vld [vmem:[%s3] sm:$0xff]
      %v408 = vld [vmem:[%s3 + $0x8] sm:$0xff]
      %v409 = vld [vmem:[%s3 + $0x10] sm:$0xff]
      %v410 = vld [vmem:[%s3 + $0x18] sm:$0xff]
      %v412 = vcombine.high %v402, %v402
      %vm413 = vcmask 31744
      %v415 = vsel %vm413, %v407, 0
      %v418 = vsel %vm413, %v408, 0
      %v421 = vsel %vm413, %v409, 0
      %v424 = vsel %vm413, %v410, 0
      %vm426 = vcmask 1043456
      %v427 = vsel %vm426, %v402, 0
      %v429 = vsel %vm426, %v412, 0
      %431 = vmatprep.subr.mxu0 %v429
      %432 = vmatpush1.msra.mxu0 %v427
      %433 = vmatprep.subr.mxu0 0.0
      %434 = vmatpush1.msra.mxu0 0.0
      %435 = vmatprep.subr.mxu0 0.0
      %436 = vmatpush1.msra.mxu0 0.0
      %437 = vmatprep.subr.mxu0 0.0
      %438 = vmatpush1.msra.mxu0 0.0
      %439 = vmatprep.subr.mxu0 0.0
      %440 = vmatpush1.msra.mxu0 0.0
      %441 = vmatprep.subr.mxu0 0.0
      %442 = vmatpush1.msra.mxu0 0.0
      %443 = vmatprep.subr.mxu0 0.0
      %444 = vmatpush1.msra.mxu0 0.0
      %445 = vmatprep.subr.mxu0 0.0
      %446 = vmatpush1.msra.mxu0 0.0
      %447 = vmatprep.subr.mxu0 0.0
      %448 = vmatpush1.msra.mxu0 0.0
      %449 = vmatprep.subr.mxu0 0.0
      %450 = vmatpush1.msra.mxu0 0.0
      %451 = vmatprep.subr.mxu0 0.0
      %452 = vmatpush1.msra.mxu0 0.0
      %453 = vmatprep.subr.mxu0 0.0
      %454 = vmatpush1.msra.mxu0 0.0
      %455 = vmatprep.subr.mxu0 0.0
      %456 = vmatpush1.msra.mxu0 0.0
      %457 = vmatprep.subr.mxu0 0.0
      %458 = vmatpush1.msra.mxu0 0.0
      %459 = vmatprep.subr.mxu0 0.0
      %460 = vmatpush1.msra.mxu0 0.0
      %461 = vmatprep.subr.mxu0 0.0
      %462 = vmatpush1.msra.mxu0 0.0
      %463 = vmatprep.subr.mxu0 0.0
      %464 = vmatpush1.msra.mxu0 0.0
      %465 = vmatprep.subr.mxu0 0.0
      %466 = vmatpush1.msra.mxu0 0.0
      %467 = vmatprep.subr.mxu0 0.0
      %468 = vmatpush1.msra.mxu0 0.0
      %469 = vmatprep.subr.mxu0 0.0
      %470 = vmatpush1.msra.mxu0 0.0
      %471 = vmatprep.subr.mxu0 0.0
      %472 = vmatpush1.msra.mxu0 0.0
      %473 = vmatprep.subr.mxu0 0.0
      %474 = vmatpush1.msra.mxu0 0.0
      %475 = vmatprep.subr.mxu0 0.0
      %476 = vmatpush1.msra.mxu0 0.0
      %477 = vmatprep.subr.mxu0 0.0
      %478 = vmatpush1.msra.mxu0 0.0
      %479 = vmatprep.subr.mxu0 0.0
      %480 = vmatpush1.msra.mxu0 0.0
      %481 = vmatprep.subr.mxu0 0.0
      %482 = vmatpush1.msra.mxu0 0.0
      %483 = vmatprep.subr.mxu0 0.0
      %484 = vmatpush1.msra.mxu0 0.0
      %485 = vmatprep.subr.mxu0 0.0
      %486 = vmatpush1.msra.mxu0 0.0
      %487 = vmatprep.subr.mxu0 0.0
      %488 = vmatpush1.msra.mxu0 0.0
      %489 = vmatprep.subr.mxu0 0.0
      %490 = vmatpush1.msra.mxu0 0.0
      %491 = vmatprep.subr.mxu0 0.0
      %492 = vmatpush1.msra.mxu0 0.0
      %493 = vmatprep.subr.mxu0 0.0
      %494 = vmatpush1.msra.mxu0 0.0
      %495 = vmatprep.mubr.f32.mxu0 0.0
      %496 = vmatmul.mubr.f32.gmra.mrb[0].mxu0 %v415
      %v497 = vpop.f32.mrb[0].mxu0
      %v498 = vadd.f32 0.0, %v497
      %v499 = vpop.f32.mrb[0].mxu0
      %v500 = vadd.f32 0.0, %v499
      %501 = vmatprep.mubr.f32.mxu0 0.0
      %502 = vmatmul.mubr.f32.gmra.mrb[0].mxu0 %v418
      %v503 = vpop.f32.mrb[0].mxu0
      %v504 = vadd.f32 0.0, %v503
      %v505 = vpop.f32.mrb[0].mxu0
      %v506 = vadd.f32 0.0, %v505
      %507 = vmatprep.mubr.f32.mxu0 0.0
      %508 = vmatmul.mubr.f32.gmra.mrb[0].mxu0 %v421
      %v509 = vpop.f32.mrb[0].mxu0
      %v510 = vadd.f32 0.0, %v509
      %v511 = vpop.f32.mrb[0].mxu0
      %v512 = vadd.f32 0.0, %v511
      %513 = vmatprep.mubr.f32.mxu0 0.0
      %514 = vmatmul.mubr.f32.gmra.mrb[0].mxu0 %v424
      %v515 = vpop.f32.mrb[0].mxu0
      %v516 = vadd.f32 0.0, %v515
      %v517 = vpop.f32.mrb[0].mxu0
      %v518 = vadd.f32 0.0, %v517
      %519 = vdwg.mxu0
      %v521 = vcombine.high %v401, %v401
      %v523 = vsel %vm413, %v403, 0
      %v526 = vsel %vm413, %v404, 0
      %v529 = vsel %vm413, %v405, 0
      %v532 = vsel %vm413, %v406, 0
      %v534 = vsel %vm426, %v401, 0
      %v536 = vsel %vm426, %v521, 0
      %538 = vmatprep.subr.mxu0 %v536
      %539 = vmatpush1.msra.mxu0 %v534
      %540 = vmatprep.subr.mxu0 0.0
      %541 = vmatpush1.msra.mxu0 0.0
      %542 = vmatprep.subr.mxu0 0.0
      %543 = vmatpush1.msra.mxu0 0.0
      %544 = vmatprep.subr.mxu0 0.0
      %545 = vmatpush1.msra.mxu0 0.0
      %546 = vmatprep.subr.mxu0 0.0
      %547 = vmatpush1.msra.mxu0 0.0
      %548 = vmatprep.subr.mxu0 0.0
      %549 = vmatpush1.msra.mxu0 0.0
      %550 = vmatprep.subr.mxu0 0.0
      %551 = vmatpush1.msra.mxu0 0.0
      %552 = vmatprep.subr.mxu0 0.0
      %553 = vmatpush1.msra.mxu0 0.0
      %554 = vmatprep.subr.mxu0 0.0
      %555 = vmatpush1.msra.mxu0 0.0
      %556 = vmatprep.subr.mxu0 0.0
      %557 = vmatpush1.msra.mxu0 0.0
      %558 = vmatprep.subr.mxu0 0.0
      %559 = vmatpush1.msra.mxu0 0.0
      %560 = vmatprep.subr.mxu0 0.0
      %561 = vmatpush1.msra.mxu0 0.0
      %562 = vmatprep.subr.mxu0 0.0
      %563 = vmatpush1.msra.mxu0 0.0
      %564 = vmatprep.subr.mxu0 0.0
      %565 = vmatpush1.msra.mxu0 0.0
      %566 = vmatprep.subr.mxu0 0.0
      %567 = vmatpush1.msra.mxu0 0.0
      %568 = vmatprep.subr.mxu0 0.0
      %569 = vmatpush1.msra.mxu0 0.0
      %570 = vmatprep.subr.mxu0 0.0
      %571 = vmatpush1.msra.mxu0 0.0
      %572 = vmatprep.subr.mxu0 0.0
      %573 = vmatpush1.msra.mxu0 0.0
      %574 = vmatprep.subr.mxu0 0.0
      %575 = vmatpush1.msra.mxu0 0.0
      %576 = vmatprep.subr.mxu0 0.0
      %577 = vmatpush1.msra.mxu0 0.0
      %578 = vmatprep.subr.mxu0 0.0
      %579 = vmatpush1.msra.mxu0 0.0
      %580 = vmatprep.subr.mxu0 0.0
      %581 = vmatpush1.msra.mxu0 0.0
      %582 = vmatprep.subr.mxu0 0.0
      %583 = vmatpush1.msra.mxu0 0.0
      %584 = vmatprep.subr.mxu0 0.0
      %585 = vmatpush1.msra.mxu0 0.0
      %586 = vmatprep.subr.mxu0 0.0
      %587 = vmatpush1.msra.mxu0 0.0
      %588 = vmatprep.subr.mxu0 0.0
      %589 = vmatpush1.msra.mxu0 0.0
      %590 = vmatprep.subr.mxu0 0.0
      %591 = vmatpush1.msra.mxu0 0.0
      %592 = vmatprep.subr.mxu0 0.0
      %593 = vmatpush1.msra.mxu0 0.0
      %594 = vmatprep.subr.mxu0 0.0
      %595 = vmatpush1.msra.mxu0 0.0
      %596 = vmatprep.subr.mxu0 0.0
      %597 = vmatpush1.msra.mxu0 0.0
      %598 = vmatprep.subr.mxu0 0.0
      %599 = vmatpush1.msra.mxu0 0.0
      %600 = vmatprep.subr.mxu0 0.0
      %601 = vmatpush1.msra.mxu0 0.0
      %602 = vmatprep.mubr.f32.mxu0 0.0
      %603 = vmatmul.mubr.f32.gmra.mrb[0].mxu0 %v523
      %v604 = vpop.f32.mrb[0].mxu0
      %v605 = vadd.f32 %v498, %v604
      %v606 = vpop.f32.mrb[0].mxu0
      %v607 = vadd.f32 %v500, %v606
      %608 = vmatprep.mubr.f32.mxu0 0.0
      %609 = vmatmul.mubr.f32.gmra.mrb[0].mxu0 %v526
      %v610 = vpop.f32.mrb[0].mxu0
      %v611 = vadd.f32 %v504, %v610
      %v612 = vpop.f32.mrb[0].mxu0
      %v613 = vadd.f32 %v506, %v612
      %614 = vmatprep.mubr.f32.mxu0 0.0
      %615 = vmatmul.mubr.f32.gmra.mrb[0].mxu0 %v529
      %v616 = vpop.f32.mrb[0].mxu0
      %v617 = vadd.f32 %v510, %v616
      %v618 = vpop.f32.mrb[0].mxu0
      %v619 = vadd.f32 %v512, %v618
      %620 = vmatprep.mubr.f32.mxu0 0.0
      %621 = vmatmul.mubr.f32.gmra.mrb[0].mxu0 %v532
      %v622 = vpop.f32.mrb[0].mxu0
      %v623 = vadd.f32 %v516, %v622
      %v624 = vpop.f32.mrb[0].mxu0
      %v625 = vadd.f32 %v518, %v624
      %626 = vdwg.mxu0
      %v627 = vld [vmem:[%s4] sm:$0xff]
      %v628 = vld [vmem:[%s4 + $0x8] sm:$0xff]
      %v629 = vld [vmem:[%s4 + $0x10] sm:$0xff]
      %v630 = vld [vmem:[%s4 + $0x18] sm:$0xff]
      %632 = vset.pattern.permute.xlu0 0
      %633 = vperm.xlu0 %632, %v627
      %v634 = vpop.permute.xlu0 %633
      %637 = vset.pattern.permute.xlu0 0
      %638 = vperm.xlu0 %637, %v628
      %v639 = vpop.permute.xlu0 %638
      %642 = vset.pattern.permute.xlu0 0
      %643 = vperm.xlu0 %642, %v629
      %v644 = vpop.permute.xlu0 %643
      %647 = vset.pattern.permute.xlu0 0
      %648 = vperm.xlu0 %647, %v630
      %v649 = vpop.permute.xlu0 %648
      %v651 = vadd.f32 %v605, %v634
      %v652 = vadd.f32 %v607, %v634
      %v653 = vadd.f32 %v611, %v639
      %v654 = vadd.f32 %v613, %v639
      %v655 = vadd.f32 %v617, %v644
      %v656 = vadd.f32 %v619, %v644
      %v657 = vadd.f32 %v623, %v649
      %v658 = vadd.f32 %v625, %v649
      %v659 = vmax.f32 %v651, 0.0
      %v660 = vmax.f32 %v652, 0.0
      %v661 = vmax.f32 %v653, 0.0
      %v662 = vmax.f32 %v654, 0.0
      %v663 = vmax.f32 %v655, 0.0
      %v664 = vmax.f32 %v656, 0.0
      %v665 = vmax.f32 %v657, 0.0
      %v666 = vmax.f32 %v658, 0.0
      %v667 = vld [vmem:[%s5] sm:$0xff]
      %v668 = vld [vmem:[%s5 + $0x8] sm:$0xff]
      %v669 = vld [vmem:[%s6] sm:$0xff]
      %v670 = vld [vmem:[%s6 + $0x8] sm:$0xff]
      %672 = vset.pattern.permute.xlu0 0
      %673 = vperm.xlu0 %672, %v669
      %v674 = vpop.permute.xlu0 %673
      %677 = vset.pattern.permute.xlu0 0
      %678 = vperm.xlu0 %677, %v670
      %v679 = vpop.permute.xlu0 %678
      %vm681 = vcmask 261120
      %v683 = vsel %vm681, %v667, 0
      %v686 = vsel %vm681, %v668, 0
      %688 = vmatprep.subr.mxu0 %v660
      %689 = vmatpush1.msra.mxu0 %v659
      %690 = vmatprep.subr.mxu0 %v662
      %691 = vmatpush1.msra.mxu0 %v661
      %692 = vmatprep.subr.mxu0 %v664
      %693 = vmatpush1.msra.mxu0 %v663
      %694 = vmatprep.subr.mxu0 %v666
      %695 = vmatpush1.msra.mxu0 %v665
      %696 = vmatprep.subr.mxu0 0.0
      %697 = vmatpush1.msra.mxu0 0.0
      %698 = vmatprep.subr.mxu0 0.0
      %699 = vmatpush1.msra.mxu0 0.0
      %700 = vmatprep.subr.mxu0 0.0
      %701 = vmatpush1.msra.mxu0 0.0
      %702 = vmatprep.subr.mxu0 0.0
      %703 = vmatpush1.msra.mxu0 0.0
      %704 = vmatprep.subr.mxu0 0.0
      %705 = vmatpush1.msra.mxu0 0.0
      %706 = vmatprep.subr.mxu0 0.0
      %707 = vmatpush1.msra.mxu0 0.0
      %708 = vmatprep.subr.mxu0 0.0
      %709 = vmatpush1.msra.mxu0 0.0
      %710 = vmatprep.subr.mxu0 0.0
      %711 = vmatpush1.msra.mxu0 0.0
      %712 = vmatprep.subr.mxu0 0.0
      %713 = vmatpush1.msra.mxu0 0.0
      %714 = vmatprep.subr.mxu0 0.0
      %715 = vmatpush1.msra.mxu0 0.0
      %716 = vmatprep.subr.mxu0 0.0
      %717 = vmatpush1.msra.mxu0 0.0
      %718 = vmatprep.subr.mxu0 0.0
      %719 = vmatpush1.msra.mxu0 0.0
      %720 = vmatprep.subr.mxu0 0.0
      %721 = vmatpush1.msra.mxu0 0.0
      %722 = vmatprep.subr.mxu0 0.0
      %723 = vmatpush1.msra.mxu0 0.0
      %724 = vmatprep.subr.mxu0 0.0
      %725 = vmatpush1.msra.mxu0 0.0
      %726 = vmatprep.subr.mxu0 0.0
      %727 = vmatpush1.msra.mxu0 0.0
      %728 = vmatprep.subr.mxu0 0.0
      %729 = vmatpush1.msra.mxu0 0.0
      %730 = vmatprep.subr.mxu0 0.0
      %731 = vmatpush1.msra.mxu0 0.0
      %732 = vmatprep.subr.mxu0 0.0
      %733 = vmatpush1.msra.mxu0 0.0
      %734 = vmatprep.subr.mxu0 0.0
      %735 = vmatpush1.msra.mxu0 0.0
      %736 = vmatprep.subr.mxu0 0.0
      %737 = vmatpush1.msra.mxu0 0.0
      %738 = vmatprep.subr.mxu0 0.0
      %739 = vmatpush1.msra.mxu0 0.0
      %740 = vmatprep.subr.mxu0 0.0
      %741 = vmatpush1.msra.mxu0 0.0
      %742 = vmatprep.subr.mxu0 0.0
      %743 = vmatpush1.msra.mxu0 0.0
      %744 = vmatprep.subr.mxu0 0.0
      %745 = vmatpush1.msra.mxu0 0.0
      %746 = vmatprep.subr.mxu0 0.0
      %747 = vmatpush1.msra.mxu0 0.0
      %748 = vmatprep.subr.mxu0 0.0
      %749 = vmatpush1.msra.mxu0 0.0
      %750 = vmatprep.subr.mxu0 0.0
      %751 = vmatpush1.msra.mxu0 0.0
      %752 = vmatprep.mubr.f32.mxu0 0.0
      %753 = vmatmul.mubr.f32.gmra.mrb[0].mxu0 %v683
      %v754 = vpop.f32.mrb[0].mxu0
      %v755 = vadd.f32 %v674, %v754
      %v756 = vpop.f32.mrb[0].mxu0
      %v757 = vadd.f32 %v674, %v756
      %758 = vmatprep.mubr.f32.mxu0 0.0
      %759 = vmatmul.mubr.f32.gmra.mrb[0].mxu0 %v686
      %v760 = vpop.f32.mrb[0].mxu0
      %v761 = vadd.f32 %v679, %v760
      %v762 = vpop.f32.mrb[0].mxu0
      %v763 = vadd.f32 %v679, %v762
      %764 = vdwg.mxu0
      %v765 = vmax.f32 %v755, 0.0
      %v766 = vmax.f32 %v757, 0.0
      %v767 = vmax.f32 %v761, 0.0
      %v768 = vmax.f32 %v763, 0.0
      %v769 = vld [vmem:[%s7] sm:$0xff]
      %v770 = vld [vmem:[%s8] sm:$0xff]
      %772 = vset.pattern.permute.xlu0 0
      %773 = vperm.xlu0 %772, %v770
      %v774 = vpop.permute.xlu0 %773
      %vm776 = vcmask 130048
      %v778 = vsel %vm776, %v769, 0
      %780 = vmatprep.subr.mxu0 %v766
      %781 = vmatpush1.msra.mxu0 %v765
      %782 = vmatprep.subr.mxu0 %v768
      %783 = vmatpush1.msra.mxu0 %v767
      %784 = vmatprep.subr.mxu0 0.0
      %785 = vmatpush1.msra.mxu0 0.0
      %786 = vmatprep.subr.mxu0 0.0
      %787 = vmatpush1.msra.mxu0 0.0
      %788 = vmatprep.subr.mxu0 0.0
      %789 = vmatpush1.msra.mxu0 0.0
      %790 = vmatprep.subr.mxu0 0.0
      %791 = vmatpush1.msra.mxu0 0.0
      %792 = vmatprep.subr.mxu0 0.0
      %793 = vmatpush1.msra.mxu0 0.0
      %794 = vmatprep.subr.mxu0 0.0
      %795 = vmatpush1.msra.mxu0 0.0
      %796 = vmatprep.subr.mxu0 0.0
      %797 = vmatpush1.msra.mxu0 0.0
      %798 = vmatprep.subr.mxu0 0.0
      %799 = vmatpush1.msra.mxu0 0.0
      %800 = vmatprep.subr.mxu0 0.0
      %801 = vmatpush1.msra.mxu0 0.0
      %802 = vmatprep.subr.mxu0 0.0
      %803 = vmatpush1.msra.mxu0 0.0
      %804 = vmatprep.subr.mxu0 0.0
      %805 = vmatpush1.msra.mxu0 0.0
      %806 = vmatprep.subr.mxu0 0.0
      %807 = vmatpush1.msra.mxu0 0.0
      %808 = vmatprep.subr.mxu0 0.0
      %809 = vmatpush1.msra.mxu0 0.0
      %810 = vmatprep.subr.mxu0 0.0
      %811 = vmatpush1.msra.mxu0 0.0
      %812 = vmatprep.subr.mxu0 0.0
      %813 = vmatpush1.msra.mxu0 0.0
      %814 = vmatprep.subr.mxu0 0.0
      %815 = vmatpush1.msra.mxu0 0.0
      %816 = vmatprep.subr.mxu0 0.0
      %817 = vmatpush1.msra.mxu0 0.0
      %818 = vmatprep.subr.mxu0 0.0
      %819 = vmatpush1.msra.mxu0 0.0
      %820 = vmatprep.subr.mxu0 0.0
      %821 = vmatpush1.msra.mxu0 0.0
      %822 = vmatprep.subr.mxu0 0.0
      %823 = vmatpush1.msra.mxu0 0.0
      %824 = vmatprep.subr.mxu0 0.0
      %825 = vmatpush1.msra.mxu0 0.0
      %826 = vmatprep.subr.mxu0 0.0
      %827 = vmatpush1.msra.mxu0 0.0
      %828 = vmatprep.subr.mxu0 0.0
      %829 = vmatpush1.msra.mxu0 0.0
      %830 = vmatprep.subr.mxu0 0.0
      %831 = vmatpush1.msra.mxu0 0.0
      %832 = vmatprep.subr.mxu0 0.0
      %833 = vmatpush1.msra.mxu0 0.0
      %834 = vmatprep.subr.mxu0 0.0
      %835 = vmatpush1.msra.mxu0 0.0
      %836 = vmatprep.subr.mxu0 0.0
      %837 = vmatpush1.msra.mxu0 0.0
      %838 = vmatprep.subr.mxu0 0.0
      %839 = vmatpush1.msra.mxu0 0.0
      %840 = vmatprep.subr.mxu0 0.0
      %841 = vmatpush1.msra.mxu0 0.0
      %842 = vmatprep.subr.mxu0 0.0
      %843 = vmatpush1.msra.mxu0 0.0
      %844 = vmatprep.mubr.f32.mxu0 0.0
      %845 = vmatmul.mubr.f32.gmra.mrb[0].mxu0 %v778
      %v846 = vpop.f32.mrb[0].mxu0
      %v847 = vadd.f32 %v774, %v846
      %v848 = vpop.f32.mrb[0].mxu0
      %v849 = vadd.f32 %v774, %v848
      %850 = vdwg.mxu0
      %v851 = vld [vmem:[%s394] sm:$0xff]
      %v852 = vadd.f32 %v847, %v849
      %853 = vadd.xlane.f32.xlu0 %v852
      %v854 = vpop.xlane.xlu0 %853
      %v855 = vadd.f32 %v851, %v854
      %vm856 = vcmask 7168
      %857 = vst.msk [vmem:[%s394] sm:$0xff] %vm856, %v855
      // Predicated region
      $region61: #{tpu_custom_call.1} parent=55 // pred_check
        %p858 = pneg %p395
      $region62: #{tpu_custom_call.1} parent=55 // pred_check_branch
        %860 = sbr.rel (%p858) target = $region64
      $region63: #{tpu_custom_call.1} parent=55 // pred_region
        %v861 = vld [vmem:[%s394] sm:$0xff]
        %v862 = vmul.f32 %v861, 0.00390625
        %863 = vst.msk [vmem:[%s394] sm:$0xff] %vm856, %v862
      $region64: #{tpu_custom_call.1} parent=55 // pred_fallthru
        _
      %p864 = scmp.lt.s32.totalorder %s24, 1
      %s865 = scalar_select %p864, %s24, 1
      %s866 = smul.addr %s865, 8
      %s867 = scalar_lea.vmem %s9, %s866
      // Predicated region
      $region65: #{tpu_custom_call.1} parent=55 // pred_check
        %p868 = pneg %p253
      $region66: #{tpu_custom_call.1} parent=55 // pred_check_branch
        %870 = sbr.rel (%p868) target = $region68
      $region67: #{tpu_custom_call.1} parent=55 // pred_region
        _
      $region68: #{tpu_custom_call.1} parent=55 // pred_fallthru
        _
    $region56: #{tpu_custom_call.1} parent=5 // pred_fallthru
      _
    %p871 = scmp.le.s32.totalorder 2, %s15
    // Predicated region
    $region69: #{tpu_custom_call.1} parent=5 // pred_check
      %p872 = pneg %p871
    $region70: #{tpu_custom_call.1} parent=5 // pred_check_branch
      %874 = sbr.rel (%p872) target = $region72
    $region71: #{tpu_custom_call.1} parent=5 // pred_region
      %s875 = ssub.s32 %s15, 2
      // Predicated region
      $region73: #{tpu_custom_call.1} parent=71 // pred_check
        %p876 = pneg %p259
      $region74: #{tpu_custom_call.1} parent=71 // pred_check_branch
        %878 = sbr.rel (%p876) target = $region76
      $region75: #{tpu_custom_call.1} parent=71 // pred_region
        %p879 = scmp.lt.s32.totalorder %s26, 1
        %s880 = scalar_select %p879, %s26, 1
        %s881 = smul.addr %s880, 8
        %s882 = scalar_lea.vmem %s9, %s881
      $region76: #{tpu_custom_call.1} parent=71 // pred_fallthru
        _
    $region72: #{tpu_custom_call.1} parent=5 // pred_fallthru
      _
  $region6: #{tpu_custom_call.1} parent=0 // loop_footer
    %s19 = sadd.s32 1, %s15
  $region7: #{tpu_custom_call.1} parent=0 // loop_footer_branch
    %14 = sbr.rel target = $region3
  $region8: #{tpu_custom_call.1} parent=0 // loop_exit
    _

</llo_original>
